<compile_context>
chip_gen: v6e
topology: v6e:2x2x1
jax: 0.10.0
libtpu: 0.0.40
codegen_flags: <defaults>
</compile_context>

<pallas_src>
import functools

import jax
import jax.numpy as jnp
from jax.experimental import pallas as pl
from jax.experimental.pallas import tpu as pltpu

EMBEDDING_DIM = 32  # globals.EMBEDDING_DIM (synthetic, small)


def _mlp_kernel(x_ref, w1_ref, w2_ref, o_ref):
    # x_ref : (TN, E)   natural-layout activation tile
    # w1_ref: (2E, E)   PyTorch Linear weight (out_features, in_features)
    # w2_ref: (E, 2E)   PyTorch Linear weight (out_features, in_features)
    # o_ref : (TN, E)   natural-layout output tile
    #
    # Compute in the transposed (feature-major) space so the token axis TN
    # sits on the 128-wide lane dimension (in-VMEM transpose = XLU, cheap):
    #   h^T = W1 @ x^T        : (2E, TN)
    #   y^T = W2 @ gelu(h^T)  : (E,  TN)
    xt = x_ref[...].T                                                  # (E, TN)

    h = jnp.dot(w1_ref[...], xt, preferred_element_type=jnp.float32)  # (2E, TN)

    # exact GELU (erf-based, matches torch.nn.GELU() default), kept in f32
    inv_sqrt2 = jnp.float32(0.7071067811865476)
    h = 0.5 * h * (1.0 + jax.lax.erf(h * inv_sqrt2))

    # second layer; cast back to the weight dtype so bf16 weights would hit
    # the fast bf16 MXU path (no-op for f32 weights)
    yt = jnp.dot(w2_ref[...], h.astype(w2_ref.dtype),
                 preferred_element_type=jnp.float32)                   # (E, TN)

    o_ref[...] = yt.T.astype(o_ref.dtype)                              # (TN, E)


@functools.partial(jax.jit, static_argnames=("tile_n",))
def mlp_forward(x, w1, w2, *, tile_n=2048):
    """Fused MLP forward: gelu(x @ w1.T, exact) @ w2.T.

    x : [..., E]   activations (natural layout, any leading dims)
    w1: [2E, E]    first Linear weight, PyTorch (out_features, in_features)
    w2: [E, 2E]    second Linear weight, PyTorch (out_features, in_features)
    """
    orig_shape = x.shape
    e = orig_shape[-1]
    hidden = w1.shape[0]
    x2d = x.reshape(-1, e)          # leading-dim merge: no data movement
    n = x2d.shape[0]

    # Row tile: multiple of 8 (sublane), capped at tile_n.  A ragged last
    # block (n % tn != 0) is handled by Pallas's masked reads/writes.
    tn = min(tile_n, pl.cdiv(n, 8) * 8)
    num_tiles = pl.cdiv(n, tn)

    out2d = pl.pallas_call(
        _mlp_kernel,
        out_shape=jax.ShapeDtypeStruct((n, e), x.dtype),
        grid_spec=pl.GridSpec(
            grid=(num_tiles,),
            in_specs=[
                pl.BlockSpec((tn, e), lambda i: (i, 0)),        # x tile
                pl.BlockSpec((hidden, e), lambda i: (0, 0)),    # W1, resident
                pl.BlockSpec((e, hidden), lambda i: (0, 0)),    # W2, resident
            ],
            out_specs=pl.BlockSpec((tn, e), lambda i: (i, 0)),
        ),
        compiler_params=pltpu.CompilerParams(
            dimension_semantics=("parallel",)),
    )(x2d, w1, w2)

    return out2d.reshape(orig_shape)


if __name__ == "__main__":
    key = jax.random.PRNGKey(0)
    k_x, k_w1, k_w2 = jax.random.split(key, 3)

    B, S, E = 2, 8, EMBEDDING_DIM

    # Deterministic synthetic parameters in PyTorch nn.Linear orientation:
    # W1: (2E, E), W2: (E, 2E), uniform(-1/sqrt(fan_in), 1/sqrt(fan_in)).
    bound1 = 1.0 / jnp.sqrt(jnp.float32(E))
    bound2 = 1.0 / jnp.sqrt(jnp.float32(2 * E))
    w1 = jax.random.uniform(k_w1, (2 * E, E), jnp.float32, -bound1, bound1)
    w2 = jax.random.uniform(k_w2, (E, 2 * E), jnp.float32, -bound2, bound2)

    x = jax.random.normal(k_x, (B, S, E), jnp.float32)

    out = mlp_forward(x, w1, w2)
    jax.block_until_ready(out)

    # Reference: same math as the PyTorch module (Linear -> exact GELU -> Linear).
    ref = jax.nn.gelu(x @ w1.T, approximate=False) @ w2.T
    assert out.shape == (B, S, E)
    # Tolerance accommodates XLA's default f32 matmul precision on TPU (may use
    # bf16 MXU passes); any structural bug would be orders of magnitude larger.
    assert jnp.allclose(out, ref, atol=5e-3, rtol=5e-3), float(
        jnp.max(jnp.abs(out - ref)))

    print("KERNEL_OK")
</pallas_src>

<mosaic_0001>
module attributes {stable_mosaic.version = 11 : i64} {
  func.func @_mlp_kernel(%arg0: i32, %arg1: memref<16x32xf32, #tpu.memory_space<vmem>>, %arg2: memref<64x32xf32, #tpu.memory_space<vmem>>, %arg3: memref<32x64xf32, #tpu.memory_space<vmem>>, %arg4: memref<16x32xf32, #tpu.memory_space<vmem>>) attributes {dimension_semantics = [#tpu.dimension_semantics<parallel>], iteration_bounds = array<i64: 1>, scalar_prefetch = 0 : i64, scratch_operands = 0 : i64, tpu.core_type = #tpu.core_type<tc>, window_params = [{transform_indices = @transform_0, window_bounds = array<i64: 16, 32>}, {pipeline_mode = #tpu.pipeline_mode<synchronous>, transform_indices = @transform_1, window_bounds = array<i64: 64, 32>}, {pipeline_mode = #tpu.pipeline_mode<synchronous>, transform_indices = @transform_2, window_bounds = array<i64: 32, 64>}, {transform_indices = @transform_3, window_bounds = array<i64: 16, 32>}]} {
    %c0 = arith.constant 0 : index
    %c0_0 = arith.constant 0 : index
    %0 = vector.load %arg1[%c0, %c0_0] : memref<16x32xf32, #tpu.memory_space<vmem>>, vector<16x32xf32>
    %1 = tpu.transpose %0, [1, 0] : vector<16x32xf32> -> vector<32x16xf32>
    %c0_1 = arith.constant 0 : index
    %c0_2 = arith.constant 0 : index
    %2 = vector.load %arg2[%c0_1, %c0_2] : memref<64x32xf32, #tpu.memory_space<vmem>>, vector<64x32xf32>
    %cst = arith.constant dense<0.000000e+00> : vector<64x16xf32>
    %3 = tpu.matmul %2, %1, %cst {dimension_numbers = #tpu.dot_dimension_numbers<[1], [0], [0], [1], [0, 0, 1, 1], [], []>} : vector<64x32xf32>, vector<32x16xf32>, vector<64x16xf32> -> vector<64x16xf32>
    %cst_3 = arith.constant 5.000000e-01 : f32
    %4 = vector.broadcast %cst_3 : f32 to vector<64x16xf32>
    %5 = arith.mulf %4, %3 : vector<64x16xf32>
    %cst_4 = arith.constant 0.707106769 : f32
    %6 = vector.broadcast %cst_4 : f32 to vector<64x16xf32>
    %7 = arith.mulf %3, %6 : vector<64x16xf32>
    %8 = math.erf %7 : vector<64x16xf32>
    %cst_5 = arith.constant 1.000000e+00 : f32
    %9 = vector.broadcast %cst_5 : f32 to vector<64x16xf32>
    %10 = arith.addf %9, %8 : vector<64x16xf32>
    %11 = arith.mulf %5, %10 : vector<64x16xf32>
    %c0_6 = arith.constant 0 : index
    %c0_7 = arith.constant 0 : index
    %12 = vector.load %arg3[%c0_6, %c0_7] : memref<32x64xf32, #tpu.memory_space<vmem>>, vector<32x64xf32>
    %cst_8 = arith.constant dense<0.000000e+00> : vector<32x16xf32>
    %13 = tpu.matmul %12, %11, %cst_8 {dimension_numbers = #tpu.dot_dimension_numbers<[1], [0], [0], [1], [0, 0, 1, 1], [], []>} : vector<32x64xf32>, vector<64x16xf32>, vector<32x16xf32> -> vector<32x16xf32>
    %14 = tpu.transpose %13, [1, 0] : vector<32x16xf32> -> vector<16x32xf32>
    %c0_9 = arith.constant 0 : index
    %c0_10 = arith.constant 0 : index
    %15 = vector.load %arg4[%c0_9, %c0_10] : memref<16x32xf32, #tpu.memory_space<vmem>>, vector<16x32xf32>
    tpu.vector_store %arg4[%c0_9, %c0_10], %14 {strides = array<i32>} : memref<16x32xf32, #tpu.memory_space<vmem>>, vector<16x32xf32>,
    return
  }
  func.func @transform_0(%arg0: i32) -> (i32, i32) {
    %c0_i32 = arith.constant 0 : i32
    %c0_i32_0 = arith.constant 0 : i32
    return %arg0, %c0_i32 : i32, i32
  }
  func.func @transform_1(%arg0: i32) -> (i32, i32) {
    %c0_i32 = arith.constant 0 : i32
    %c0_i32_0 = arith.constant 0 : i32
    %c0_i32_1 = arith.constant 0 : i32
    return %c0_i32, %c0_i32_0 : i32, i32
  }
  func.func @transform_2(%arg0: i32) -> (i32, i32) {
    %c0_i32 = arith.constant 0 : i32
    %c0_i32_0 = arith.constant 0 : i32
    %c0_i32_1 = arith.constant 0 : i32
    return %c0_i32, %c0_i32_0 : i32, i32
  }
  func.func @transform_3(%arg0: i32) -> (i32, i32) {
    %c0_i32 = arith.constant 0 : i32
    %c0_i32_0 = arith.constant 0 : i32
    return %arg0, %c0_i32 : i32, i32
  }
}

</mosaic_0001>

<llo_original>
// kernel: mlp_forward.1
$region0: #{mlp_forward.1}
  #allocation0 [shape = 'u32[]', space=smem, size = 0x4, offset = 0x4, fixed_abs, tag = 'smem constant byte address 0x4 - core index']
  #allocation1 [shape = 'u32[144,128]{1,0:T(1,128)}', space=vmem, size = 0x12000, scoped, tag = 'internal scratch']
  %s0 = inlined_call_operand.vmem [shape: f32[16,32], index: 0, kind: input, shape index: {}]
  %s1 = inlined_call_operand.vmem [shape: f32[64,32], index: 1, kind: input, shape index: {}]
  %s2 = inlined_call_operand.vmem [shape: f32[32,64], index: 2, kind: input, shape index: {}]
  %s3 = inlined_call_operand.hbm [shape: f32[16,32], index: 3, kind: output, shape index: {}]
  %s4 = sld [smem:[#allocation0]]
  $region22: #{mlp_forward.1} parent=0
    _
  %s6 = ssub.s32 1, %s4
  %s7 = scalar_select 0, %s6, %s4
  $region1: #{mlp_forward.1} parent=0
    #allocation2 [shape = 'u8[8192]{0}', space=vmem, size = 0x2000, scoped, tag = 'output window, operand 0, single buffered']
    #allocation3 [shape = 's32[1]{0}', space=sflag, size = 0x4, scoped, tag = 'scoped memory for mlp_forward.1']
    %8 = vsyncpa [#allocation3], 0
    // Predicated region
    $region2: #{mlp_forward.1} parent=1 // pred_check
      _
    $region3: #{mlp_forward.1} parent=1 // pred_check_branch
      %10 = sbr.rel (0) target = $region5
    $region4: #{mlp_forward.1} parent=1 // pred_region
      _
    $region5: #{mlp_forward.1} parent=1 // pred_fallthru
      _
    // Predicated region
    $region6: #{mlp_forward.1} parent=1 // pred_check
      _
    $region7: #{mlp_forward.1} parent=1 // pred_check_branch
      %12 = sbr.rel (0) target = $region9
    $region8: #{mlp_forward.1} parent=1 // pred_region
      _
    $region9: #{mlp_forward.1} parent=1 // pred_fallthru
      _
    // Predicated region
    $region10: #{mlp_forward.1} parent=1 // pred_check
      _
    $region11: #{mlp_forward.1} parent=1 // pred_check_branch
      %14 = sbr.rel (0) target = $region13
    $region12: #{mlp_forward.1} parent=1 // pred_region
      _
    $region13: #{mlp_forward.1} parent=1 // pred_fallthru
      _
    %v15 = vld [vmem:[%s0] sm:$0xff]
    %v16 = vld [vmem:[%s0 + $0x8] sm:$0xff]
    %v17 = vld [vmem:[%s1] sm:$0xff]
    %v18 = vld [vmem:[%s1 + $0x8] sm:$0xff]
    %v19 = vld [vmem:[%s1 + $0x10] sm:$0xff]
    %v20 = vld [vmem:[%s1 + $0x18] sm:$0xff]
    %v21 = vld [vmem:[%s1 + $0x20] sm:$0xff]
    %v22 = vld [vmem:[%s1 + $0x28] sm:$0xff]
    %v23 = vld [vmem:[%s1 + $0x30] sm:$0xff]
    %v24 = vld [vmem:[%s1 + $0x38] sm:$0xff]
    %vm25 = vcmask 261120
    %v27 = vsel %vm25, %v17, 0
    %v30 = vsel %vm25, %v18, 0
    %v33 = vsel %vm25, %v19, 0
    %v36 = vsel %vm25, %v20, 0
    %v39 = vsel %vm25, %v21, 0
    %v42 = vsel %vm25, %v22, 0
    %v45 = vsel %vm25, %v23, 0
    %v48 = vsel %vm25, %v24, 0
    %v51 = vsel %vm25, %v15, 0
    %v54 = vsel %vm25, %v16, 0
    %56 = vmatprep.subr.mxu0 0.0
    %57 = vmatpush1.xpose.msra.mxu0 0.0
    %58 = vmatprep.subr.mxu0 0.0
    %59 = vmatpush1.xpose.msra.mxu0 0.0
    %60 = vmatprep.subr.mxu0 0.0
    %61 = vmatpush1.xpose.msra.mxu0 0.0
    %62 = vmatprep.subr.mxu0 0.0
    %63 = vmatpush1.xpose.msra.mxu0 0.0
    %64 = vmatprep.subr.mxu0 0.0
    %65 = vmatpush1.xpose.msra.mxu0 0.0
    %66 = vmatprep.subr.mxu0 0.0
    %67 = vmatpush1.xpose.msra.mxu0 0.0
    %68 = vmatprep.subr.mxu0 0.0
    %69 = vmatpush1.xpose.msra.mxu0 0.0
    %70 = vmatprep.subr.mxu0 0.0
    %71 = vmatpush1.xpose.msra.mxu0 0.0
    %72 = vmatprep.subr.mxu0 0.0
    %73 = vmatpush1.xpose.msra.mxu0 0.0
    %74 = vmatprep.subr.mxu0 0.0
    %75 = vmatpush1.xpose.msra.mxu0 0.0
    %76 = vmatprep.subr.mxu0 0.0
    %77 = vmatpush1.xpose.msra.mxu0 0.0
    %78 = vmatprep.subr.mxu0 0.0
    %79 = vmatpush1.xpose.msra.mxu0 0.0
    %80 = vmatprep.subr.mxu0 0.0
    %81 = vmatpush1.xpose.msra.mxu0 0.0
    %82 = vmatprep.subr.mxu0 0.0
    %83 = vmatpush1.xpose.msra.mxu0 0.0
    %84 = vmatprep.subr.mxu0 0.0
    %85 = vmatpush1.xpose.msra.mxu0 %v54
    %86 = vmatprep.subr.mxu0 0.0
    %87 = vmatpush1.xpose.msra.mxu0 %v51
    %88 = vmatprep.subr.mxu0 0.0
    %89 = vmatpush2.xpose.msra.mxu0 0.0
    %90 = vmatprep.subr.mxu0 0.0
    %91 = vmatpush2.xpose.msra.mxu0 0.0
    %92 = vmatprep.subr.mxu0 0.0
    %93 = vmatpush2.xpose.msra.mxu0 0.0
    %94 = vmatprep.subr.mxu0 0.0
    %95 = vmatpush2.xpose.msra.mxu0 0.0
    %96 = vmatprep.subr.mxu0 0.0
    %97 = vmatpush2.xpose.msra.mxu0 0.0
    %98 = vmatprep.subr.mxu0 0.0
    %99 = vmatpush2.xpose.msra.mxu0 0.0
    %100 = vmatprep.subr.mxu0 0.0
    %101 = vmatpush2.xpose.msra.mxu0 0.0
    %102 = vmatprep.subr.mxu0 0.0
    %103 = vmatpush2.xpose.msra.mxu0 0.0
    %104 = vmatprep.subr.mxu0 0.0
    %105 = vmatpush2.xpose.msra.mxu0 0.0
    %106 = vmatprep.subr.mxu0 0.0
    %107 = vmatpush2.xpose.msra.mxu0 0.0
    %108 = vmatprep.subr.mxu0 0.0
    %109 = vmatpush2.xpose.msra.mxu0 0.0
    %110 = vmatprep.subr.mxu0 0.0
    %111 = vmatpush2.xpose.msra.mxu0 0.0
    %112 = vmatprep.subr.mxu0 0.0
    %113 = vmatpush2.xpose.msra.mxu0 0.0
    %114 = vmatprep.subr.mxu0 0.0
    %115 = vmatpush2.xpose.msra.mxu0 0.0
    %116 = vmatprep.subr.mxu0 0.0
    %117 = vmatpush2.xpose.msra.mxu0 0.0
    %118 = vmatprep.subr.mxu0 0.0
    %119 = vmatpush2.xpose.msra.mxu0 0.0
    %120 = vmatprep.mubr.f32.mxu0 0.0
    %121 = vmatmul.mubr.f32.gmra.mxu0 %v27
    %v122 = vpop.f32.mrf.mxu0
    %v123 = vadd.f32 0.0, %v122
    %v124 = vpop.f32.mrf.mxu0
    %125 = vmatprep.mubr.f32.mxu0 0.0
    %126 = vmatmul.mubr.f32.gmra.mxu0 %v30
    %v127 = vpop.f32.mrf.mxu0
    %v128 = vadd.f32 0.0, %v127
    %v129 = vpop.f32.mrf.mxu0
    %130 = vmatprep.mubr.f32.mxu0 0.0
    %131 = vmatmul.mubr.f32.gmra.mxu0 %v33
    %v132 = vpop.f32.mrf.mxu0
    %v133 = vadd.f32 0.0, %v132
    %v134 = vpop.f32.mrf.mxu0
    %135 = vmatprep.mubr.f32.mxu0 0.0
    %136 = vmatmul.mubr.f32.gmra.mxu0 %v36
    %v137 = vpop.f32.mrf.mxu0
    %v138 = vadd.f32 0.0, %v137
    %v139 = vpop.f32.mrf.mxu0
    %140 = vmatprep.mubr.f32.mxu0 0.0
    %141 = vmatmul.mubr.f32.gmra.mxu0 %v39
    %v142 = vpop.f32.mrf.mxu0
    %v143 = vadd.f32 0.0, %v142
    %v144 = vpop.f32.mrf.mxu0
    %145 = vmatprep.mubr.f32.mxu0 0.0
    %146 = vmatmul.mubr.f32.gmra.mxu0 %v42
    %v147 = vpop.f32.mrf.mxu0
    %v148 = vadd.f32 0.0, %v147
    %v149 = vpop.f32.mrf.mxu0
    %150 = vmatprep.mubr.f32.mxu0 0.0
    %151 = vmatmul.mubr.f32.gmra.mxu0 %v45
    %v152 = vpop.f32.mrf.mxu0
    %v153 = vadd.f32 0.0, %v152
    %v154 = vpop.f32.mrf.mxu0
    %155 = vmatprep.mubr.f32.mxu0 0.0
    %156 = vmatmul.mubr.f32.gmra.mxu0 %v48
    %v157 = vpop.f32.mrf.mxu0
    %v158 = vadd.f32 0.0, %v157
    %v159 = vpop.f32.mrf.mxu0
    %160 = vdwg.mxu0
    %v161 = vmul.f32 %v123, 0.5
    %v162 = vmul.f32 %v128, 0.5
    %v163 = vmul.f32 %v133, 0.5
    %v164 = vmul.f32 %v138, 0.5
    %v165 = vmul.f32 %v143, 0.5
    %v166 = vmul.f32 %v148, 0.5
    %v167 = vmul.f32 %v153, 0.5
    %v168 = vmul.f32 %v158, 0.5
    %v169 = vmul.f32 %v123, 0.70710677
    %v170 = vmul.f32 %v128, 0.70710677
    %v171 = vmul.f32 %v133, 0.70710677
    %v172 = vmul.f32 %v138, 0.70710677
    %v173 = vmul.f32 %v143, 0.70710677
    %v174 = vmul.f32 %v148, 0.70710677
    %v175 = vmul.f32 %v153, 0.70710677
    %v176 = vmul.f32 %v158, 0.70710677
    %v177 = verf.f32.pop %v169
    %v178 = verf.f32.pop %v170
    %v179 = verf.f32.pop %v171
    %v180 = verf.f32.pop %v172
    %v181 = verf.f32.pop %v173
    %v182 = verf.f32.pop %v174
    %v183 = verf.f32.pop %v175
    %v184 = verf.f32.pop %v176
    %v185 = vadd.f32 %v177, 1.0
    %v186 = vadd.f32 %v178, 1.0
    %v187 = vadd.f32 %v179, 1.0
    %v188 = vadd.f32 %v180, 1.0
    %v189 = vadd.f32 %v181, 1.0
    %v190 = vadd.f32 %v182, 1.0
    %v191 = vadd.f32 %v183, 1.0
    %v192 = vadd.f32 %v184, 1.0
    %v193 = vmul.f32 %v161, %v185
    %v194 = vmul.f32 %v162, %v186
    %v195 = vmul.f32 %v163, %v187
    %v196 = vmul.f32 %v164, %v188
    %v197 = vmul.f32 %v165, %v189
    %v198 = vmul.f32 %v166, %v190
    %v199 = vmul.f32 %v167, %v191
    %v200 = vmul.f32 %v168, %v192
    %v201 = vld [vmem:[%s2] sm:$0xff]
    %v202 = vld [vmem:[%s2 + $0x8] sm:$0xff]
    %v203 = vld [vmem:[%s2 + $0x10] sm:$0xff]
    %v204 = vld [vmem:[%s2 + $0x18] sm:$0xff]
    %vm205 = vcmask 523264
    %v207 = vsel %vm205, %v201, 0
    %v210 = vsel %vm205, %v202, 0
    %v213 = vsel %vm205, %v203, 0
    %v216 = vsel %vm205, %v204, 0
    %218 = vmatprep.subr.mxu0 0.0
    %219 = vmatpush1.msra.mxu0 0.0
    %220 = vmatprep.subr.mxu0 0.0
    %221 = vmatpush1.msra.mxu0 0.0
    %222 = vmatprep.subr.mxu0 0.0
    %223 = vmatpush1.msra.mxu0 0.0
    %224 = vmatprep.subr.mxu0 0.0
    %225 = vmatpush1.msra.mxu0 0.0
    %226 = vmatprep.subr.mxu0 0.0
    %227 = vmatpush1.msra.mxu0 0.0
    %228 = vmatprep.subr.mxu0 0.0
    %229 = vmatpush1.msra.mxu0 0.0
    %230 = vmatprep.subr.mxu0 0.0
    %231 = vmatpush1.msra.mxu0 0.0
    %232 = vmatprep.subr.mxu0 0.0
    %233 = vmatpush1.msra.mxu0 0.0
    %234 = vmatprep.subr.mxu0 0.0
    %235 = vmatpush1.msra.mxu0 %v200
    %236 = vmatprep.subr.mxu0 0.0
    %237 = vmatpush1.msra.mxu0 %v199
    %238 = vmatprep.subr.mxu0 0.0
    %239 = vmatpush1.msra.mxu0 %v198
    %240 = vmatprep.subr.mxu0 0.0
    %241 = vmatpush1.msra.mxu0 %v197
    %242 = vmatprep.subr.mxu0 0.0
    %243 = vmatpush1.msra.mxu0 %v196
    %244 = vmatprep.subr.mxu0 0.0
    %245 = vmatpush1.msra.mxu0 %v195
    %246 = vmatprep.subr.mxu0 0.0
    %247 = vmatpush1.msra.mxu0 %v194
    %248 = vmatprep.subr.mxu0 0.0
    %249 = vmatpush1.msra.mxu0 %v193
    %250 = vmatprep.subr.mxu0 0.0
    %251 = vmatpush2.msra.mxu0 0.0
    %252 = vmatprep.subr.mxu0 0.0
    %253 = vmatpush2.msra.mxu0 0.0
    %254 = vmatprep.subr.mxu0 0.0
    %255 = vmatpush2.msra.mxu0 0.0
    %256 = vmatprep.subr.mxu0 0.0
    %257 = vmatpush2.msra.mxu0 0.0
    %258 = vmatprep.subr.mxu0 0.0
    %259 = vmatpush2.msra.mxu0 0.0
    %260 = vmatprep.subr.mxu0 0.0
    %261 = vmatpush2.msra.mxu0 0.0
    %262 = vmatprep.subr.mxu0 0.0
    %263 = vmatpush2.msra.mxu0 0.0
    %264 = vmatprep.subr.mxu0 0.0
    %265 = vmatpush2.msra.mxu0 0.0
    %266 = vmatprep.subr.mxu0 0.0
    %267 = vmatpush2.msra.mxu0 0.0
    %268 = vmatprep.subr.mxu0 0.0
    %269 = vmatpush2.msra.mxu0 0.0
    %270 = vmatprep.subr.mxu0 0.0
    %271 = vmatpush2.msra.mxu0 0.0
    %272 = vmatprep.subr.mxu0 0.0
    %273 = vmatpush2.msra.mxu0 0.0
    %274 = vmatprep.subr.mxu0 0.0
    %275 = vmatpush2.msra.mxu0 0.0
    %276 = vmatprep.subr.mxu0 0.0
    %277 = vmatpush2.msra.mxu0 0.0
    %278 = vmatprep.subr.mxu0 0.0
    %279 = vmatpush2.msra.mxu0 0.0
    %280 = vmatprep.subr.mxu0 0.0
    %281 = vmatpush2.msra.mxu0 0.0
    %282 = vmatprep.mubr.f32.mxu0 0.0
    %283 = vmatmul.mubr.f32.gmra.mxu0 %v207
    %v284 = vpop.f32.mrf.mxu0
    %v285 = vadd.f32 0.0, %v284
    %v286 = vpop.f32.mrf.mxu0
    %287 = vmatprep.mubr.f32.mxu0 0.0
    %288 = vmatmul.mubr.f32.gmra.mxu0 %v210
    %v289 = vpop.f32.mrf.mxu0
    %v290 = vadd.f32 0.0, %v289
    %v291 = vpop.f32.mrf.mxu0
    %292 = vmatprep.mubr.f32.mxu0 0.0
    %293 = vmatmul.mubr.f32.gmra.mxu0 %v213
    %v294 = vpop.f32.mrf.mxu0
    %v295 = vadd.f32 0.0, %v294
    %v296 = vpop.f32.mrf.mxu0
    %297 = vmatprep.mubr.f32.mxu0 0.0
    %298 = vmatmul.mubr.f32.gmra.mxu0 %v216
    %v299 = vpop.f32.mrf.mxu0
    %v300 = vadd.f32 0.0, %v299
    %v301 = vpop.f32.mrf.mxu0
    %302 = vdwg.mxu0
    %303 = vxpose.xlu0.b32.start [1/16] %v285, 128
    %304 = vxpose.xlu0.b32.cont [2/16] %v290, 128
    %305 = vxpose.xlu0.b32.cont [3/16] %v295, 128
    %306 = vxpose.xlu0.b32.cont [4/16] %v300, 128
    %307 = vxpose.xlu0.b32.cont [5/16] 0.0, 128
    %308 = vxpose.xlu0.b32.cont [6/16] 0.0, 128
    %309 = vxpose.xlu0.b32.cont [7/16] 0.0, 128
    %310 = vxpose.xlu0.b32.cont [8/16] 0.0, 128
    %311 = vxpose.xlu0.b32.cont [9/16] 0.0, 128
    %312 = vxpose.xlu0.b32.cont [10/16] 0.0, 128
    %313 = vxpose.xlu0.b32.cont [11/16] 0.0, 128
    %314 = vxpose.xlu0.b32.cont [12/16] 0.0, 128
    %315 = vxpose.xlu0.b32.cont [13/16] 0.0, 128
    %316 = vxpose.xlu0.b32.cont [14/16] 0.0, 128
    %317 = vxpose.xlu0.b32.cont [15/16] 0.0, 128
    %318 = vxpose.xlu0.b32.end [16/16] 0.0, 128
    %v319 = vpop.trf.xlu0
    %v320 = vpop.trf.xlu0
    %v321 = vpop.trf.xlu0
    %v322 = vpop.trf.xlu0
    %v323 = vpop.trf.xlu0
    %v324 = vpop.trf.xlu0
    %v325 = vpop.trf.xlu0
    %v326 = vpop.trf.xlu0
    %v327 = vpop.trf.xlu0
    %v328 = vpop.trf.xlu0
    %v329 = vpop.trf.xlu0
    %v330 = vpop.trf.xlu0
    %v331 = vpop.trf.xlu0
    %v332 = vpop.trf.xlu0
    %v333 = vpop.trf.xlu0
    %v334 = vpop.trf.xlu0
    %335 = vst.msk [vmem:[#allocation2] sm:$0xff] %vm25, %v319
    %336 = vst.msk [vmem:[#allocation2 + $0x8] sm:$0xff] %vm25, %v320
    // Predicated region
    $region14: #{mlp_forward.1} parent=1 // pred_check
      _
    $region15: #{mlp_forward.1} parent=1 // pred_check_branch
      %338 = sbr.rel (0) target = $region17
    $region16: #{mlp_forward.1} parent=1 // pred_region
      %s340 = ssub.s32 256, 256
      %341 = vsyncadd [#allocation3], %s340
      %s342 = sshll.u32 [#allocation2], 4
      %s343 = int_to_ptr.vmem [resolvable:$true] %s342
      %348 = dma.vmem_to_hbm [thread:$0]  %s343, 256, %s3, [#allocation3], 128, 128, 8
    $region17: #{mlp_forward.1} parent=1 // pred_fallthru
      _
    // Predicated region
    $region18: #{mlp_forward.1} parent=1 // pred_check
      _
    $region19: #{mlp_forward.1} parent=1 // pred_check_branch
      %350 = sbr.rel (0) target = $region21
    $region20: #{mlp_forward.1} parent=1 // pred_region
      %351 = dma.done [#allocation3], 256
    $region21: #{mlp_forward.1} parent=1 // pred_fallthru
      _
    %352 = vsyncpa [#allocation3], 1

</llo_original>
